<compile_context>
chip_gen: v5e
topology: v5e:2x2
jax: 0.10.0
libtpu: 0.0.40
codegen_flags: <defaults>
</compile_context>

<pallas_src>
import jax
import jax.numpy as jnp
from jax.experimental import pallas as pl
from jax.experimental.pallas import tpu as pltpu


# --------------------------------------------------------------------------
# Fused kernel: per grid step = one graph (n_nodes rows)
# --------------------------------------------------------------------------
def _net_fused_kernel(x_ref, adj_ref, w1_ref, b1_ref, w2_ref, b2_ref,
                      rw1_ref, rb1_ref, rw2_ref, rb2_ref, out_ref):
    n_nodes = x_ref.shape[1]

    xb = x_ref[0]                                   # [n_nodes, F]        f32
    adj_b = adj_ref[0]                              # [n_nodes, n_nodes]  bf16

    # ---- MsgPassLayer.mlp : relu(relu(x @ W1 + b1) @ W2 + b2) per node ----
    h = jnp.dot(xb.astype(jnp.bfloat16), w1_ref[...],
                preferred_element_type=jnp.float32) + b1_ref[...]
    h = jnp.maximum(h, 0.0)
    m = jnp.dot(h.astype(jnp.bfloat16), w2_ref[...],
                preferred_element_type=jnp.float32) + b2_ref[...]
    m = jnp.maximum(m, 0.0)

    # ---- aggr='add' over edges == adj_b @ messages (f32 accumulation) ----
    agg = jnp.dot(adj_b, m.astype(jnp.bfloat16),
                  preferred_element_type=jnp.float32)         # [n_nodes, F] f32

    # ---- readout fc1 on the flattened graph vector, without a lane reshape:
    #        vec(agg) @ RW1 == sum_n agg[n:n+1, :] @ RW1[n]
    h2 = rb1_ref[...]                                         # [1, 64] f32
    for node in range(n_nodes):                               # static unroll (small n_nodes)
        h2 = h2 + jnp.dot(agg[node:node + 1, :].astype(jnp.bfloat16),
                          rw1_ref[node],
                          preferred_element_type=jnp.float32)
    h2 = jnp.maximum(h2, 0.0)

    # ---- readout fc2 (+ final ReLU, per reference MLP) into a lane-dense block
    o = jnp.dot(h2.astype(jnp.bfloat16), rw2_ref[...],
                preferred_element_type=jnp.float32) + rb2_ref[...]
    out_ref[0] = jnp.maximum(o, 0.0)                          # [1, out_pad]


# --------------------------------------------------------------------------
# Net.forward wrapper
# --------------------------------------------------------------------------
def net_forward(x, edge_index, params, n_nodes):
    n, f = x.shape
    batch = n // n_nodes

    w1, b1, w2, b2 = params["mp1"]
    rw1, rb1, rw2, rb2 = params["readout"]
    hid = w1.shape[1]              # 16
    ro_hid = rw1.shape[1]          # 64
    out_dim = rw2.shape[1]         # n_nodes * n_trains
    out_pad = ((out_dim + 127) // 128) * 128     # lane-dense output width

    # ---- host-side glue (layout prep; constant-folded under jit) -----------
    x3 = x.reshape(batch, n_nodes, f)            # contiguous row-major reshape

    # Block-diagonal per-graph adjacency: adj[g, i, j] = #edges (j -> i) in graph g.
    # TODO(synk): cross-graph edges (non-standard PyG batching) are dropped here.
    src, tgt = edge_index[0], edge_index[1]
    g = tgt // n_nodes
    same = ((src // n_nodes) == g).astype(jnp.float32)
    adj = jnp.zeros((batch, n_nodes, n_nodes), jnp.float32)
    adj = adj.at[g, tgt % n_nodes, src % n_nodes].add(same)
    adj = adj.astype(jnp.bfloat16)               # small integer counts: exact in bf16

    # bf16 MXU operands (one-time casts); pad final layer to 128 lanes.
    w1b = w1.astype(jnp.bfloat16)
    w2b = w2.astype(jnp.bfloat16)
    rw1b = rw1.reshape(n_nodes, f, ro_hid).astype(jnp.bfloat16)
    rw2b = jnp.pad(rw2, ((0, 0), (0, out_pad - out_dim))).astype(jnp.bfloat16)
    rb2p = jnp.pad(rb2, ((0, 0), (0, out_pad - out_dim)))

    # ---- advisory cost estimate for XLA scheduling --------------------------
    flops = 2 * batch * (n_nodes * f * hid + n_nodes * hid * f
                         + n_nodes * n_nodes * f
                         + n_nodes * f * ro_hid + ro_hid * out_pad)
    inputs = (x3, adj, w1b, b1, w2b, b2, rw1b, rb1, rw2b, rb2p)
    bytes_accessed = sum(a.size * jnp.dtype(a.dtype).itemsize for a in inputs)
    bytes_accessed += batch * out_pad * 4
    cost = pl.CostEstimate(flops=int(flops), transcendentals=0,
                           bytes_accessed=int(bytes_accessed))

    const2 = lambda b: (0, 0)
    const3 = lambda b: (0, 0, 0)

    out = pl.pallas_call(
        _net_fused_kernel,
        out_shape=jax.ShapeDtypeStruct((batch, 1, out_pad), jnp.float32),
        grid=(batch,),
        in_specs=[
            pl.BlockSpec((1, n_nodes, f), lambda b: (b, 0, 0)),        # x (per graph)
            pl.BlockSpec((1, n_nodes, n_nodes), lambda b: (b, 0, 0)),  # adj (per graph)
            pl.BlockSpec((f, hid), const2),                            # mp W1 (resident)
            pl.BlockSpec((1, hid), const2),                            # mp b1
            pl.BlockSpec((hid, f), const2),                            # mp W2
            pl.BlockSpec((1, f), const2),                              # mp b2
            pl.BlockSpec((n_nodes, f, ro_hid), const3),                # readout W1 [n,F,64]
            pl.BlockSpec((1, ro_hid), const2),                         # readout b1
            pl.BlockSpec((ro_hid, out_pad), const2),                   # readout W2 (padded)
            pl.BlockSpec((1, out_pad), const2),                        # readout b2 (padded)
        ],
        out_specs=pl.BlockSpec((1, 1, out_pad), lambda b: (b, 0, 0)),
        compiler_params=pltpu.CompilerParams(
            dimension_semantics=("parallel",)),
        cost_estimate=cost,
    )(x3, adj, w1b, b1, w2b, b2, rw1b, rb1, rw2b, rb2p)

    return out[:, 0, :out_dim]                   # slice off the lane padding


# --------------------------------------------------------------------------
# Parameter init (deterministic, PyTorch-Linear-style uniform init)
# --------------------------------------------------------------------------
def _linear_params(key, fan_in, fan_out):
    k_w, k_b = jax.random.split(key)
    bound = 1.0 / (fan_in ** 0.5)
    # stored transposed: [in, out], so forward is x @ W + b
    w = jax.random.uniform(k_w, (fan_in, fan_out), jnp.float32, -bound, bound)
    b = jax.random.uniform(k_b, (1, fan_out), jnp.float32, -bound, bound)
    return w, b


def init_net_params(key, n_trains, n_nodes):
    feature_size = n_trains + n_nodes
    k1, k2, k3, k4 = jax.random.split(key, 4)
    # msg_passing_1.mlp : MLP(feature_size, feature_size, hidsize=16)
    mp1_w1, mp1_b1 = _linear_params(k1, feature_size, 16)
    mp1_w2, mp1_b2 = _linear_params(k2, 16, feature_size)
    # readout_mlp : MLP(feature_size * n_nodes, n_nodes * n_trains, hidsize=64)
    ro_w1, ro_b1 = _linear_params(k3, feature_size * n_nodes, 64)
    ro_w2, ro_b2 = _linear_params(k4, 64, n_nodes * n_trains)
    return {
        "mp1": (mp1_w1, mp1_b1, mp1_w2, mp1_b2),
        "readout": (ro_w1, ro_b1, ro_w2, ro_b2),
    }


# --------------------------------------------------------------------------
if __name__ == "__main__":
    n_trains, n_nodes, batch = 2, 4, 2
    feature_size = n_trains + n_nodes          # 6
    n = batch * n_nodes                        # 8 graph nodes total

    key = jax.random.PRNGKey(0)
    k_params, k_x = jax.random.split(key)
    params = init_net_params(k_params, n_trains, n_nodes)

    x = jax.random.normal(k_x, (n, feature_size), jnp.float32)

    # deterministic edge_index: bidirectional ring within each graph of n_nodes
    src, tgt = [], []
    for b in range(batch):
        for i in range(n_nodes):
            a = b * n_nodes + i
            c = b * n_nodes + (i + 1) % n_nodes
            src += [a, c]
            tgt += [c, a]
    edge_index = jnp.array([src, tgt], dtype=jnp.int32)   # [2, E]

    out = net_forward(x, edge_index, params, n_nodes)
    out = jax.block_until_ready(out)
    assert out.shape == (batch, n_nodes * n_trains), out.shape
    assert out.dtype == jnp.float32
    print("KERNEL_OK")
</pallas_src>

<mosaic_0001>
module attributes {stable_mosaic.version = 11 : i64} {
  func.func @_net_fused_kernel(%arg0: i32, %arg1: memref<1x4x6xf32, #tpu.memory_space<vmem>>, %arg2: memref<1x4x4xbf16, #tpu.memory_space<vmem>>, %arg3: memref<6x16xbf16, #tpu.memory_space<vmem>>, %arg4: memref<1x16xf32, #tpu.memory_space<vmem>>, %arg5: memref<16x6xbf16, #tpu.memory_space<vmem>>, %arg6: memref<1x6xf32, #tpu.memory_space<vmem>>, %arg7: memref<4x6x64xbf16, #tpu.memory_space<vmem>>, %arg8: memref<1x64xf32, #tpu.memory_space<vmem>>, %arg9: memref<64x128xbf16, #tpu.memory_space<vmem>>, %arg10: memref<1x128xf32, #tpu.memory_space<vmem>>, %arg11: memref<1x1x128xf32, #tpu.memory_space<vmem>>) attributes {dimension_semantics = [#tpu.dimension_semantics<parallel>], iteration_bounds = array<i64: 2>, scalar_prefetch = 0 : i64, scratch_operands = 0 : i64, tpu.core_type = #tpu.core_type<tc>, window_params = [{transform_indices = @transform_0, window_bounds = array<i64: 1, 4, 6>}, {transform_indices = @transform_1, window_bounds = array<i64: 1, 4, 4>}, {pipeline_mode = #tpu.pipeline_mode<synchronous>, transform_indices = @transform_2, window_bounds = array<i64: 6, 16>}, {pipeline_mode = #tpu.pipeline_mode<synchronous>, transform_indices = @transform_3, window_bounds = array<i64: 1, 16>}, {pipeline_mode = #tpu.pipeline_mode<synchronous>, transform_indices = @transform_4, window_bounds = array<i64: 16, 6>}, {pipeline_mode = #tpu.pipeline_mode<synchronous>, transform_indices = @transform_5, window_bounds = array<i64: 1, 6>}, {pipeline_mode = #tpu.pipeline_mode<synchronous>, transform_indices = @transform_6, window_bounds = array<i64: 4, 6, 64>}, {pipeline_mode = #tpu.pipeline_mode<synchronous>, transform_indices = @transform_7, window_bounds = array<i64: 1, 64>}, {pipeline_mode = #tpu.pipeline_mode<synchronous>, transform_indices = @transform_8, window_bounds = array<i64: 64, 128>}, {pipeline_mode = #tpu.pipeline_mode<synchronous>, transform_indices = @transform_9, window_bounds = array<i64: 1, 128>}, {transform_indices = @transform_10, window_bounds = array<i64: 1, 1, 128>}]} {
    %c0 = arith.constant 0 : index
    %c0_0 = arith.constant 0 : index
    %c0_1 = arith.constant 0 : index
    %0 = vector.load %arg1[%c0, %c0_0, %c0_1] : memref<1x4x6xf32, #tpu.memory_space<vmem>>, vector<1x4x6xf32>
    %1 = vector.shape_cast %0 : vector<1x4x6xf32> to vector<4x6xf32>
    %c0_2 = arith.constant 0 : index
    %c0_3 = arith.constant 0 : index
    %c0_4 = arith.constant 0 : index
    %2 = vector.load %arg2[%c0_2, %c0_3, %c0_4] : memref<1x4x4xbf16, #tpu.memory_space<vmem>>, vector<1x4x4xbf16>
    %3 = vector.shape_cast %2 : vector<1x4x4xbf16> to vector<4x4xbf16>
    %4 = arith.truncf %1 : vector<4x6xf32> to vector<4x6xbf16>
    %c0_5 = arith.constant 0 : index
    %c0_6 = arith.constant 0 : index
    %5 = vector.load %arg3[%c0_5, %c0_6] : memref<6x16xbf16, #tpu.memory_space<vmem>>, vector<6x16xbf16>
    %cst = arith.constant dense<0.000000e+00> : vector<4x16xf32>
    %6 = tpu.matmul %4, %5, %cst {dimension_numbers = #tpu.dot_dimension_numbers<[1], [0], [0], [1], [0, 0, 1, 1], [], []>} : vector<4x6xbf16>, vector<6x16xbf16>, vector<4x16xf32> -> vector<4x16xf32>
    %c0_7 = arith.constant 0 : index
    %c0_8 = arith.constant 0 : index
    %7 = vector.load %arg4[%c0_7, %c0_8] : memref<1x16xf32, #tpu.memory_space<vmem>>, vector<1x16xf32>
    %8 = vector.broadcast %7 : vector<1x16xf32> to vector<4x16xf32>
    %9 = arith.addf %6, %8 : vector<4x16xf32>
    %cst_9 = arith.constant 0.000000e+00 : f32
    %10 = vector.broadcast %cst_9 : f32 to vector<4x16xf32>
    %11 = arith.maximumf %9, %10 : vector<4x16xf32>
    %12 = arith.truncf %11 : vector<4x16xf32> to vector<4x16xbf16>
    %c0_10 = arith.constant 0 : index
    %c0_11 = arith.constant 0 : index
    %13 = vector.load %arg5[%c0_10, %c0_11] : memref<16x6xbf16, #tpu.memory_space<vmem>>, vector<16x6xbf16>
    %cst_12 = arith.constant dense<0.000000e+00> : vector<4x6xf32>
    %14 = tpu.matmul %12, %13, %cst_12 {dimension_numbers = #tpu.dot_dimension_numbers<[1], [0], [0], [1], [0, 0, 1, 1], [], []>} : vector<4x16xbf16>, vector<16x6xbf16>, vector<4x6xf32> -> vector<4x6xf32>
    %c0_13 = arith.constant 0 : index
    %c0_14 = arith.constant 0 : index
    %15 = vector.load %arg6[%c0_13, %c0_14] : memref<1x6xf32, #tpu.memory_space<vmem>>, vector<1x6xf32>
    %16 = vector.broadcast %15 : vector<1x6xf32> to vector<4x6xf32>
    %17 = arith.addf %14, %16 : vector<4x6xf32>
    %cst_15 = arith.constant 0.000000e+00 : f32
    %18 = vector.broadcast %cst_15 : f32 to vector<4x6xf32>
    %19 = arith.maximumf %17, %18 : vector<4x6xf32>
    %20 = arith.truncf %19 : vector<4x6xf32> to vector<4x6xbf16>
    %cst_16 = arith.constant dense<0.000000e+00> : vector<4x6xf32>
    %21 = tpu.matmul %3, %20, %cst_16 {dimension_numbers = #tpu.dot_dimension_numbers<[1], [0], [0], [1], [0, 0, 1, 1], [], []>} : vector<4x4xbf16>, vector<4x6xbf16>, vector<4x6xf32> -> vector<4x6xf32>
    %c0_17 = arith.constant 0 : index
    %c0_18 = arith.constant 0 : index
    %22 = vector.load %arg8[%c0_17, %c0_18] : memref<1x64xf32, #tpu.memory_space<vmem>>, vector<1x64xf32>
    %23 = vector.extract_strided_slice %21 {offsets = [0, 0], sizes = [1, 6], strides = [1, 1]} : vector<4x6xf32> to vector<1x6xf32>
    %24 = arith.truncf %23 : vector<1x6xf32> to vector<1x6xbf16>
    %c0_19 = arith.constant 0 : index
    %c0_20 = arith.constant 0 : index
    %c0_21 = arith.constant 0 : index
    %25 = vector.load %arg7[%c0_19, %c0_20, %c0_21] : memref<4x6x64xbf16, #tpu.memory_space<vmem>>, vector<1x6x64xbf16>
    %26 = vector.shape_cast %25 : vector<1x6x64xbf16> to vector<6x64xbf16>
    %cst_22 = arith.constant dense<0.000000e+00> : vector<1x64xf32>
    %27 = tpu.matmul %24, %26, %cst_22 {dimension_numbers = #tpu.dot_dimension_numbers<[1], [0], [0], [1], [0, 0, 1, 1], [], []>} : vector<1x6xbf16>, vector<6x64xbf16>, vector<1x64xf32> -> vector<1x64xf32>
    %28 = arith.addf %22, %27 : vector<1x64xf32>
    %29 = vector.extract_strided_slice %21 {offsets = [1, 0], sizes = [1, 6], strides = [1, 1]} : vector<4x6xf32> to vector<1x6xf32>
    %30 = arith.truncf %29 : vector<1x6xf32> to vector<1x6xbf16>
    %c1 = arith.constant 1 : index
    %c0_23 = arith.constant 0 : index
    %c0_24 = arith.constant 0 : index
    %31 = vector.load %arg7[%c1, %c0_23, %c0_24] : memref<4x6x64xbf16, #tpu.memory_space<vmem>>, vector<1x6x64xbf16>
    %32 = vector.shape_cast %31 : vector<1x6x64xbf16> to vector<6x64xbf16>
    %cst_25 = arith.constant dense<0.000000e+00> : vector<1x64xf32>
    %33 = tpu.matmul %30, %32, %cst_25 {dimension_numbers = #tpu.dot_dimension_numbers<[1], [0], [0], [1], [0, 0, 1, 1], [], []>} : vector<1x6xbf16>, vector<6x64xbf16>, vector<1x64xf32> -> vector<1x64xf32>
    %34 = arith.addf %28, %33 : vector<1x64xf32>
    %35 = vector.extract_strided_slice %21 {offsets = [2, 0], sizes = [1, 6], strides = [1, 1]} : vector<4x6xf32> to vector<1x6xf32>
    %36 = arith.truncf %35 : vector<1x6xf32> to vector<1x6xbf16>
    %c2 = arith.constant 2 : index
    %c0_26 = arith.constant 0 : index
    %c0_27 = arith.constant 0 : index
    %37 = vector.load %arg7[%c2, %c0_26, %c0_27] : memref<4x6x64xbf16, #tpu.memory_space<vmem>>, vector<1x6x64xbf16>
    %38 = vector.shape_cast %37 : vector<1x6x64xbf16> to vector<6x64xbf16>
    %cst_28 = arith.constant dense<0.000000e+00> : vector<1x64xf32>
    %39 = tpu.matmul %36, %38, %cst_28 {dimension_numbers = #tpu.dot_dimension_numbers<[1], [0], [0], [1], [0, 0, 1, 1], [], []>} : vector<1x6xbf16>, vector<6x64xbf16>, vector<1x64xf32> -> vector<1x64xf32>
    %40 = arith.addf %34, %39 : vector<1x64xf32>
    %41 = vector.extract_strided_slice %21 {offsets = [3, 0], sizes = [1, 6], strides = [1, 1]} : vector<4x6xf32> to vector<1x6xf32>
    %42 = arith.truncf %41 : vector<1x6xf32> to vector<1x6xbf16>
    %c3 = arith.constant 3 : index
    %c0_29 = arith.constant 0 : index
    %c0_30 = arith.constant 0 : index
    %43 = vector.load %arg7[%c3, %c0_29, %c0_30] : memref<4x6x64xbf16, #tpu.memory_space<vmem>>, vector<1x6x64xbf16>
    %44 = vector.shape_cast %43 : vector<1x6x64xbf16> to vector<6x64xbf16>
    %cst_31 = arith.constant dense<0.000000e+00> : vector<1x64xf32>
    %45 = tpu.matmul %42, %44, %cst_31 {dimension_numbers = #tpu.dot_dimension_numbers<[1], [0], [0], [1], [0, 0, 1, 1], [], []>} : vector<1x6xbf16>, vector<6x64xbf16>, vector<1x64xf32> -> vector<1x64xf32>
    %46 = arith.addf %40, %45 : vector<1x64xf32>
    %cst_32 = arith.constant 0.000000e+00 : f32
    %47 = vector.broadcast %cst_32 : f32 to vector<1x64xf32>
    %48 = arith.maximumf %46, %47 : vector<1x64xf32>
    %49 = arith.truncf %48 : vector<1x64xf32> to vector<1x64xbf16>
    %c0_33 = arith.constant 0 : index
    %c0_34 = arith.constant 0 : index
    %50 = vector.load %arg9[%c0_33, %c0_34] : memref<64x128xbf16, #tpu.memory_space<vmem>>, vector<64x128xbf16>
    %cst_35 = arith.constant dense<0.000000e+00> : vector<1x128xf32>
    %51 = tpu.matmul %49, %50, %cst_35 {dimension_numbers = #tpu.dot_dimension_numbers<[1], [0], [0], [1], [0, 0, 1, 1], [], []>} : vector<1x64xbf16>, vector<64x128xbf16>, vector<1x128xf32> -> vector<1x128xf32>
    %c0_36 = arith.constant 0 : index
    %c0_37 = arith.constant 0 : index
    %52 = vector.load %arg10[%c0_36, %c0_37] : memref<1x128xf32, #tpu.memory_space<vmem>>, vector<1x128xf32>
    %53 = arith.addf %51, %52 : vector<1x128xf32>
    %cst_38 = arith.constant 0.000000e+00 : f32
    %54 = vector.broadcast %cst_38 : f32 to vector<1x128xf32>
    %55 = arith.maximumf %53, %54 : vector<1x128xf32>
    %c0_39 = arith.constant 0 : index
    %c0_40 = arith.constant 0 : index
    %c0_41 = arith.constant 0 : index
    %56 = vector.load %arg11[%c0_39, %c0_40, %c0_41] : memref<1x1x128xf32, #tpu.memory_space<vmem>>, vector<1x1x128xf32>
    %57 = vector.shape_cast %56 : vector<1x1x128xf32> to vector<1x128xf32>
    %58 = vector.shape_cast %55 : vector<1x128xf32> to vector<1x1x128xf32>
    tpu.vector_store %arg11[%c0_39, %c0_40, %c0_41], %58 {strides = array<i32>} : memref<1x1x128xf32, #tpu.memory_space<vmem>>, vector<1x1x128xf32>,
    return
  }
  func.func @transform_0(%arg0: i32) -> (i32, i32, i32) {
    %c0_i32 = arith.constant 0 : i32
    %c0_i32_0 = arith.constant 0 : i32
    %c0_i32_1 = arith.constant 0 : i32
    return %arg0, %c0_i32, %c0_i32_0 : i32, i32, i32
  }
  func.func @transform_1(%arg0: i32) -> (i32, i32, i32) {
    %c0_i32 = arith.constant 0 : i32
    %c0_i32_0 = arith.constant 0 : i32
    %c0_i32_1 = arith.constant 0 : i32
    return %arg0, %c0_i32, %c0_i32_0 : i32, i32, i32
  }
  func.func @transform_2(%arg0: i32) -> (i32, i32) {
    %c0_i32 = arith.constant 0 : i32
    %c0_i32_0 = arith.constant 0 : i32
    %c0_i32_1 = arith.constant 0 : i32
    return %c0_i32, %c0_i32_0 : i32, i32
  }
  func.func @transform_3(%arg0: i32) -> (i32, i32) {
    %c0_i32 = arith.constant 0 : i32
    %c0_i32_0 = arith.constant 0 : i32
    %c0_i32_1 = arith.constant 0 : i32
    return %c0_i32, %c0_i32_0 : i32, i32
  }
  func.func @transform_4(%arg0: i32) -> (i32, i32) {
    %c0_i32 = arith.constant 0 : i32
    %c0_i32_0 = arith.constant 0 : i32
    %c0_i32_1 = arith.constant 0 : i32
    return %c0_i32, %c0_i32_0 : i32, i32
  }
  func.func @transform_5(%arg0: i32) -> (i32, i32) {
    %c0_i32 = arith.constant 0 : i32
    %c0_i32_0 = arith.constant 0 : i32
    %c0_i32_1 = arith.constant 0 : i32
    return %c0_i32, %c0_i32_0 : i32, i32
  }
  func.func @transform_6(%arg0: i32) -> (i32, i32, i32) {
    %c0_i32 = arith.constant 0 : i32
    %c0_i32_0 = arith.constant 0 : i32
    %c0_i32_1 = arith.constant 0 : i32
    %c0_i32_2 = arith.constant 0 : i32
    return %c0_i32, %c0_i32_0, %c0_i32_1 : i32, i32, i32
  }
  func.func @transform_7(%arg0: i32) -> (i32, i32) {
    %c0_i32 = arith.constant 0 : i32
    %c0_i32_0 = arith.constant 0 : i32
    %c0_i32_1 = arith.constant 0 : i32
    return %c0_i32, %c0_i32_0 : i32, i32
  }
  func.func @transform_8(%arg0: i32) -> (i32, i32) {
    %c0_i32 = arith.constant 0 : i32
    %c0_i32_0 = arith.constant 0 : i32
    %c0_i32_1 = arith.constant 0 : i32
    return %c0_i32, %c0_i32_0 : i32, i32
  }
  func.func @transform_9(%arg0: i32) -> (i32, i32) {
    %c0_i32 = arith.constant 0 : i32
    %c0_i32_0 = arith.constant 0 : i32
    %c0_i32_1 = arith.constant 0 : i32
    return %c0_i32, %c0_i32_0 : i32, i32
  }
  func.func @transform_10(%arg0: i32) -> (i32, i32, i32) {
    %c0_i32 = arith.constant 0 : i32
    %c0_i32_0 = arith.constant 0 : i32
    %c0_i32_1 = arith.constant 0 : i32
    return %arg0, %c0_i32, %c0_i32_0 : i32, i32, i32
  }
}

</mosaic_0001>

<llo_original>
// kernel: tpu_custom_call.1
$region0: #{tpu_custom_call.1}
  #allocation0 [shape = 'u32[]', space=smem, size = 0x4, offset = 0x4, fixed_abs, tag = 'smem constant byte address 0x4 - core index']
  #allocation1 [shape = 'u32[72,128]{1,0:T(1,128)}', space=vmem, size = 0x9000, scoped, tag = 'internal scratch']
  %s0 = inlined_call_operand.vmem [shape: f32[2,4,6], index: 0, kind: input, shape index: {}]
  %s1 = inlined_call_operand.vmem [shape: bf16[2,4,4], index: 1, kind: input, shape index: {}]
  %s2 = inlined_call_operand.hbm [shape: bf16[6,16], index: 2, kind: input, shape index: {}]
  %s3 = inlined_call_operand.vmem [shape: f32[1,16], index: 3, kind: input, shape index: {}]
  %s4 = inlined_call_operand.vmem [shape: bf16[16,6], index: 4, kind: input, shape index: {}]
  %s5 = inlined_call_operand.vmem [shape: f32[1,6], index: 5, kind: input, shape index: {}]
  %s6 = inlined_call_operand.vmem [shape: bf16[4,6,64], index: 6, kind: input, shape index: {}]
  %s7 = inlined_call_operand.vmem [shape: f32[1,64], index: 7, kind: input, shape index: {}]
  %s8 = inlined_call_operand.vmem [shape: bf16[64,128], index: 8, kind: input, shape index: {}]
  %s9 = inlined_call_operand.vmem [shape: f32[1,128], index: 9, kind: input, shape index: {}]
  %s10 = inlined_call_operand.hbm [shape: f32[2,1,128], index: 10, kind: output, shape index: {}]
  %s11 = sld [smem:[#allocation0]]
  $region77: #{tpu_custom_call.1} parent=0
    _
  %s13 = ssub.s32 1, %s11
  %s14 = scalar_select 0, %s13, %s11
  $region1: #{tpu_custom_call.1} parent=0
    #allocation2 [shape = 'u8[2048]{0}', space=vmem, size = 0x800, scoped, tag = 'input window, operand 2, single buffered']
    #allocation3 [shape = 's32[2]{0}', space=sflag, size = 0x8, scoped, tag = 'scoped memory for tpu_custom_call.1']
    #allocation4 [shape = 's32[2]{0}', space=sflag, size = 0x8, scoped, tag = 'scoped memory for tpu_custom_call.1']
    #allocation5 [shape = 'u8[1024]{0}', space=vmem, size = 0x400, scoped, tag = 'output window, operand 0']
    %15 = vsyncpa [#allocation3], 0
    %16 = vsyncpa [#allocation4], 0
    %s17 = scalar_lea.sflag [#allocation4], 1
    %18 = vsyncpa %s17, 0
    loop: start=0, step=1, limit=4
    $region2: #{tpu_custom_call.1} parent=1 // loop_pre_header
      _
    $region3: #{tpu_custom_call.1} parent=1 // loop_header
      %s20 = sphi 0, %s24
      %p21 = scmp.ge.s32.totalorder %s20, 4
      %s30 = sphi 0, %s32
      %s33 = sphi 0, %s30
      %s34 = sphi 0, %s33
      %s50 = sphi 0, %s34
      %s56 = sphi 0, %s58
      %s59 = sphi 0, %s56
      %s60 = sphi 0, %s59
      %s76 = sphi 0, %s60
      %s80 = sphi 0, %s80
      %s82 = sphi 0, %s80
      %s83 = sphi 0, %s82
      %s97 = sphi 0, %s83
      %s101 = sphi 0, %s101
      %s103 = sphi 0, %s101
      %s104 = sphi 0, %s103
      %s118 = sphi 0, %s104
      %s122 = sphi 0, %s122
      %s124 = sphi 0, %s122
      %s125 = sphi 0, %s124
      %s139 = sphi 0, %s125
      %s143 = sphi 0, %s143
      %s145 = sphi 0, %s143
      %s146 = sphi 0, %s145
      %s160 = sphi 0, %s146
      %s164 = sphi 0, %s164
      %s166 = sphi 0, %s164
      %s167 = sphi 0, %s166
      %s181 = sphi 0, %s167
      %s185 = sphi 0, %s185
      %s187 = sphi 0, %s185
      %s188 = sphi 0, %s187
      %s202 = sphi 0, %s188
      %s206 = sphi 0, %s206
      %s208 = sphi 0, %s206
      %s209 = sphi 0, %s208
      %s223 = sphi 0, %s209
      %s227 = sphi 0, %s227
      %s229 = sphi 0, %s227
      %s230 = sphi 0, %s229
      %s244 = sphi 0, %s230
      %s250 = sphi 0, %s252
      %s253 = sphi 0, %s250
      %s254 = sphi 0, %s253
      %s270 = sphi 0, %s254
    $region4: #{tpu_custom_call.1} parent=1 // loop_header_branch
      %23 = sbr.rel (%p21) target = $region8
    $region5: #{tpu_custom_call.1} parent=1 // loop_body
      %s25 = ssub.s32 %s20, 1
      %s26 = ssub.s32 %s20, 2
      %s27 = sadd.s32 %s20, 1
      %s28 = ssub.s32 %s20, %s27
      %p29 = scmp.eq.s32.totalorder %s28, 0
      %s31 = sadd.s32 %s30, 1
      %s32 = scalar_select %p29, %s30, %s31
      %p35 = pneg %p29
      %p36 = scmp.eq.s32.totalorder %s20, 1
      %p37 = por %p35, %p36
      %p38 = scmp.ne.s32.totalorder %s30, %s33
      %p39 = scmp.eq.s32.totalorder %s20, 0
      %p40 = por %p38, %p39
      %p41 = scmp.ne.s32.totalorder %s30, %s33
      %p42 = scmp.eq.s32.totalorder %s25, 1
      %p43 = por %p41, %p42
      %p44 = scmp.ne.s32.totalorder %s33, %s34
      %p45 = scmp.eq.s32.totalorder %s25, 0
      %p46 = por %p44, %p45
      %p47 = scmp.ne.s32.totalorder %s33, %s34
      %p48 = scmp.eq.s32.totalorder %s26, 1
      %p49 = por %p47, %p48
      %p51 = scmp.ne.s32.totalorder %s34, %s50
      %p52 = scmp.eq.s32.totalorder %s26, 0
      %p53 = por %p51, %p52
      %s54 = ssub.s32 %s20, %s27
      %p55 = scmp.eq.s32.totalorder %s54, 0
      %s57 = sadd.s32 %s56, 1
      %s58 = scalar_select %p55, %s56, %s57
      %p61 = pneg %p55
      %p62 = scmp.eq.s32.totalorder %s20, 1
      %p63 = por %p61, %p62
      %p64 = scmp.ne.s32.totalorder %s56, %s59
      %p65 = scmp.eq.s32.totalorder %s20, 0
      %p66 = por %p64, %p65
      %p67 = scmp.ne.s32.totalorder %s56, %s59
      %p68 = scmp.eq.s32.totalorder %s25, 1
      %p69 = por %p67, %p68
      %p70 = scmp.ne.s32.totalorder %s59, %s60
      %p71 = scmp.eq.s32.totalorder %s25, 0
      %p72 = por %p70, %p71
      %p73 = scmp.ne.s32.totalorder %s59, %s60
      %p74 = scmp.eq.s32.totalorder %s26, 1
      %p75 = por %p73, %p74
      %p77 = scmp.ne.s32.totalorder %s60, %s76
      %p78 = scmp.eq.s32.totalorder %s26, 0
      %p79 = por %p77, %p78
      %s81 = sadd.s32 %s80, 1
      %p84 = scmp.eq.s32.totalorder %s20, 1
      %p85 = scmp.ne.s32.totalorder %s80, %s82
      %p86 = scmp.eq.s32.totalorder %s20, 0
      %p87 = por %p85, %p86
      %p88 = scmp.ne.s32.totalorder %s80, %s82
      %p89 = scmp.eq.s32.totalorder %s25, 1
      %p90 = por %p88, %p89
      %p91 = scmp.ne.s32.totalorder %s82, %s83
      %p92 = scmp.eq.s32.totalorder %s25, 0
      %p93 = por %p91, %p92
      %p94 = scmp.ne.s32.totalorder %s82, %s83
      %p95 = scmp.eq.s32.totalorder %s26, 1
      %p96 = por %p94, %p95
      %p98 = scmp.ne.s32.totalorder %s83, %s97
      %p99 = scmp.eq.s32.totalorder %s26, 0
      %p100 = por %p98, %p99
      %s102 = sadd.s32 %s101, 1
      %p105 = scmp.eq.s32.totalorder %s20, 1
      %p106 = scmp.ne.s32.totalorder %s101, %s103
      %p107 = scmp.eq.s32.totalorder %s20, 0
      %p108 = por %p106, %p107
      %p109 = scmp.ne.s32.totalorder %s101, %s103
      %p110 = scmp.eq.s32.totalorder %s25, 1
      %p111 = por %p109, %p110
      %p112 = scmp.ne.s32.totalorder %s103, %s104
      %p113 = scmp.eq.s32.totalorder %s25, 0
      %p114 = por %p112, %p113
      %p115 = scmp.ne.s32.totalorder %s103, %s104
      %p116 = scmp.eq.s32.totalorder %s26, 1
      %p117 = por %p115, %p116
      %p119 = scmp.ne.s32.totalorder %s104, %s118
      %p120 = scmp.eq.s32.totalorder %s26, 0
      %p121 = por %p119, %p120
      %s123 = sadd.s32 %s122, 1
      %p126 = scmp.eq.s32.totalorder %s20, 1
      %p127 = scmp.ne.s32.totalorder %s122, %s124
      %p128 = scmp.eq.s32.totalorder %s20, 0
      %p129 = por %p127, %p128
      %p130 = scmp.ne.s32.totalorder %s122, %s124
      %p131 = scmp.eq.s32.totalorder %s25, 1
      %p132 = por %p130, %p131
      %p133 = scmp.ne.s32.totalorder %s124, %s125
      %p134 = scmp.eq.s32.totalorder %s25, 0
      %p135 = por %p133, %p134
      %p136 = scmp.ne.s32.totalorder %s124, %s125
      %p137 = scmp.eq.s32.totalorder %s26, 1
      %p138 = por %p136, %p137
      %p140 = scmp.ne.s32.totalorder %s125, %s139
      %p141 = scmp.eq.s32.totalorder %s26, 0
      %p142 = por %p140, %p141
      %s144 = sadd.s32 %s143, 1
      %p147 = scmp.eq.s32.totalorder %s20, 1
      %p148 = scmp.ne.s32.totalorder %s143, %s145
      %p149 = scmp.eq.s32.totalorder %s20, 0
      %p150 = por %p148, %p149
      %p151 = scmp.ne.s32.totalorder %s143, %s145
      %p152 = scmp.eq.s32.totalorder %s25, 1
      %p153 = por %p151, %p152
      %p154 = scmp.ne.s32.totalorder %s145, %s146
      %p155 = scmp.eq.s32.totalorder %s25, 0
      %p156 = por %p154, %p155
      %p157 = scmp.ne.s32.totalorder %s145, %s146
      %p158 = scmp.eq.s32.totalorder %s26, 1
      %p159 = por %p157, %p158
      %p161 = scmp.ne.s32.totalorder %s146, %s160
      %p162 = scmp.eq.s32.totalorder %s26, 0
      %p163 = por %p161, %p162
      %s165 = sadd.s32 %s164, 1
      %p168 = scmp.eq.s32.totalorder %s20, 1
      %p169 = scmp.ne.s32.totalorder %s164, %s166
      %p170 = scmp.eq.s32.totalorder %s20, 0
      %p171 = por %p169, %p170
      %p172 = scmp.ne.s32.totalorder %s164, %s166
      %p173 = scmp.eq.s32.totalorder %s25, 1
      %p174 = por %p172, %p173
      %p175 = scmp.ne.s32.totalorder %s166, %s167
      %p176 = scmp.eq.s32.totalorder %s25, 0
      %p177 = por %p175, %p176
      %p178 = scmp.ne.s32.totalorder %s166, %s167
      %p179 = scmp.eq.s32.totalorder %s26, 1
      %p180 = por %p178, %p179
      %p182 = scmp.ne.s32.totalorder %s167, %s181
      %p183 = scmp.eq.s32.totalorder %s26, 0
      %p184 = por %p182, %p183
      %s186 = sadd.s32 %s185, 1
      %p189 = scmp.eq.s32.totalorder %s20, 1
      %p190 = scmp.ne.s32.totalorder %s185, %s187
      %p191 = scmp.eq.s32.totalorder %s20, 0
      %p192 = por %p190, %p191
      %p193 = scmp.ne.s32.totalorder %s185, %s187
      %p194 = scmp.eq.s32.totalorder %s25, 1
      %p195 = por %p193, %p194
      %p196 = scmp.ne.s32.totalorder %s187, %s188
      %p197 = scmp.eq.s32.totalorder %s25, 0
      %p198 = por %p196, %p197
      %p199 = scmp.ne.s32.totalorder %s187, %s188
      %p200 = scmp.eq.s32.totalorder %s26, 1
      %p201 = por %p199, %p200
      %p203 = scmp.ne.s32.totalorder %s188, %s202
      %p204 = scmp.eq.s32.totalorder %s26, 0
      %p205 = por %p203, %p204
      %s207 = sadd.s32 %s206, 1
      %p210 = scmp.eq.s32.totalorder %s20, 1
      %p211 = scmp.ne.s32.totalorder %s206, %s208
      %p212 = scmp.eq.s32.totalorder %s20, 0
      %p213 = por %p211, %p212
      %p214 = scmp.ne.s32.totalorder %s206, %s208
      %p215 = scmp.eq.s32.totalorder %s25, 1
      %p216 = por %p214, %p215
      %p217 = scmp.ne.s32.totalorder %s208, %s209
      %p218 = scmp.eq.s32.totalorder %s25, 0
      %p219 = por %p217, %p218
      %p220 = scmp.ne.s32.totalorder %s208, %s209
      %p221 = scmp.eq.s32.totalorder %s26, 1
      %p222 = por %p220, %p221
      %p224 = scmp.ne.s32.totalorder %s209, %s223
      %p225 = scmp.eq.s32.totalorder %s26, 0
      %p226 = por %p224, %p225
      %s228 = sadd.s32 %s227, 1
      %p231 = scmp.eq.s32.totalorder %s20, 1
      %p232 = scmp.ne.s32.totalorder %s227, %s229
      %p233 = scmp.eq.s32.totalorder %s20, 0
      %p234 = por %p232, %p233
      %p235 = scmp.ne.s32.totalorder %s227, %s229
      %p236 = scmp.eq.s32.totalorder %s25, 1
      %p237 = por %p235, %p236
      %p238 = scmp.ne.s32.totalorder %s229, %s230
      %p239 = scmp.eq.s32.totalorder %s25, 0
      %p240 = por %p238, %p239
      %p241 = scmp.ne.s32.totalorder %s229, %s230
      %p242 = scmp.eq.s32.totalorder %s26, 1
      %p243 = por %p241, %p242
      %p245 = scmp.ne.s32.totalorder %s230, %s244
      %p246 = scmp.eq.s32.totalorder %s26, 0
      %p247 = por %p245, %p246
      %s248 = ssub.s32 %s20, %s27
      %p249 = scmp.eq.s32.totalorder %s248, 0
      %s251 = sadd.s32 %s250, 1
      %s252 = scalar_select %p249, %s250, %s251
      %p255 = pneg %p249
      %p256 = scmp.eq.s32.totalorder %s20, 1
      %p257 = por %p255, %p256
      %p258 = scmp.ne.s32.totalorder %s250, %s253
      %p259 = scmp.eq.s32.totalorder %s20, 0
      %p260 = por %p258, %p259
      %p261 = scmp.ne.s32.totalorder %s250, %s253
      %p262 = scmp.eq.s32.totalorder %s25, 1
      %p263 = por %p261, %p262
      %p264 = scmp.ne.s32.totalorder %s253, %s254
      %p265 = scmp.eq.s32.totalorder %s25, 0
      %p266 = por %p264, %p265
      %p267 = scmp.ne.s32.totalorder %s253, %s254
      %p268 = scmp.eq.s32.totalorder %s26, 1
      %p269 = por %p267, %p268
      %p271 = scmp.ne.s32.totalorder %s254, %s270
      %p272 = scmp.eq.s32.totalorder %s26, 0
      %p273 = por %p271, %p272
      %p274 = scmp.le.s32.totalorder 1, %s20
      %p275 = scmp.lt.s32.totalorder %s20, 3
      %p276 = pnand %p274, %p275
      %p277 = pneg %p276
      // Predicated region
      $region9: #{tpu_custom_call.1} parent=5 // pred_check
        _
      $region10: #{tpu_custom_call.1} parent=5 // pred_check_branch
        %279 = sbr.rel (%p276) target = $region12
      $region11: #{tpu_custom_call.1} parent=5 // pred_region
        %s280 = ssub.s32 %s20, 1
        // Predicated region
        $region13: #{tpu_custom_call.1} parent=11 // pred_check
          %p281 = pneg %p93
        $region14: #{tpu_custom_call.1} parent=11 // pred_check_branch
          %283 = sbr.rel (%p281) target = $region16
        $region15: #{tpu_custom_call.1} parent=11 // pred_region
          %285 = vsyncadd [#allocation3], 0
          %s287 = sshll.u32 %s2, 4
          %s288 = int_to_ptr.hbm [resolvable:$true] %s287
          %s289 = sshll.u32 [#allocation2], 4
          %s290 = int_to_ptr.vmem [resolvable:$true] %s289
          %292 = dma.hbm_to_vmem [thread:$0]  %s288, 64, %s290, [#allocation3]
        $region16: #{tpu_custom_call.1} parent=11 // pred_fallthru
          _
        // Predicated region
        $region17: #{tpu_custom_call.1} parent=11 // pred_check
          %p293 = pneg %p114
        $region18: #{tpu_custom_call.1} parent=11 // pred_check_branch
          %295 = sbr.rel (%p293) target = $region20
        $region19: #{tpu_custom_call.1} parent=11 // pred_region
          _
        $region20: #{tpu_custom_call.1} parent=11 // pred_fallthru
          _
        // Predicated region
        $region21: #{tpu_custom_call.1} parent=11 // pred_check
          %p296 = pneg %p135
        $region22: #{tpu_custom_call.1} parent=11 // pred_check_branch
          %298 = sbr.rel (%p296) target = $region24
        $region23: #{tpu_custom_call.1} parent=11 // pred_region
          _
        $region24: #{tpu_custom_call.1} parent=11 // pred_fallthru
          _
        // Predicated region
        $region25: #{tpu_custom_call.1} parent=11 // pred_check
          %p299 = pneg %p156
        $region26: #{tpu_custom_call.1} parent=11 // pred_check_branch
          %301 = sbr.rel (%p299) target = $region28
        $region27: #{tpu_custom_call.1} parent=11 // pred_region
          _
        $region28: #{tpu_custom_call.1} parent=11 // pred_fallthru
          _
        // Predicated region
        $region29: #{tpu_custom_call.1} parent=11 // pred_check
          %p302 = pneg %p177
        $region30: #{tpu_custom_call.1} parent=11 // pred_check_branch
          %304 = sbr.rel (%p302) target = $region32
        $region31: #{tpu_custom_call.1} parent=11 // pred_region
          _
        $region32: #{tpu_custom_call.1} parent=11 // pred_fallthru
          _
        // Predicated region
        $region33: #{tpu_custom_call.1} parent=11 // pred_check
          %p305 = pneg %p198
        $region34: #{tpu_custom_call.1} parent=11 // pred_check_branch
          %307 = sbr.rel (%p305) target = $region36
        $region35: #{tpu_custom_call.1} parent=11 // pred_region
          _
        $region36: #{tpu_custom_call.1} parent=11 // pred_fallthru
          _
        // Predicated region
        $region37: #{tpu_custom_call.1} parent=11 // pred_check
          %p308 = pneg %p219
        $region38: #{tpu_custom_call.1} parent=11 // pred_check_branch
          %310 = sbr.rel (%p308) target = $region40
        $region39: #{tpu_custom_call.1} parent=11 // pred_region
          _
        $region40: #{tpu_custom_call.1} parent=11 // pred_fallthru
          _
        // Predicated region
        $region41: #{tpu_custom_call.1} parent=11 // pred_check
          %p311 = pneg %p240
        $region42: #{tpu_custom_call.1} parent=11 // pred_check_branch
          %313 = sbr.rel (%p311) target = $region44
        $region43: #{tpu_custom_call.1} parent=11 // pred_region
          _
        $region44: #{tpu_custom_call.1} parent=11 // pred_fallthru
          _
      $region12: #{tpu_custom_call.1} parent=5 // pred_fallthru
        _
      %p314 = scmp.lt.s32.totalorder %s20, 2
      // Predicated region
      $region45: #{tpu_custom_call.1} parent=5 // pred_check
        %p315 = pneg %p314
      $region46: #{tpu_custom_call.1} parent=5 // pred_check_branch
        %317 = sbr.rel (%p315) target = $region48
      $region47: #{tpu_custom_call.1} parent=5 // pred_region
        // Predicated region
        $region49: #{tpu_custom_call.1} parent=47 // pred_check
          %p318 = pneg %p40
        $region50: #{tpu_custom_call.1} parent=47 // pred_check_branch
          %320 = sbr.rel (%p318) target = $region52
        $region51: #{tpu_custom_call.1} parent=47 // pred_region
          %p321 = scmp.lt.s32.totalorder %s20, 1
          %s322 = scalar_select %p321, %s20, 1
          %s323 = smul.addr %s322, 4
          %s324 = scalar_lea.vmem %s0, %s323
        $region52: #{tpu_custom_call.1} parent=47 // pred_fallthru
          _
        // Predicated region
        $region53: #{tpu_custom_call.1} parent=47 // pred_check
          %p325 = pneg %p66
        $region54: #{tpu_custom_call.1} parent=47 // pred_check_branch
          %327 = sbr.rel (%p325) target = $region56
        $region55: #{tpu_custom_call.1} parent=47 // pred_region
          %p328 = scmp.lt.s32.totalorder %s20, 1
          %s329 = scalar_select %p328, %s20, 1
          %s330 = smul.addr %s329, 2
          %s331 = scalar_lea.vmem %s1, %s330
        $region56: #{tpu_custom_call.1} parent=47 // pred_fallthru
          _
      $region48: #{tpu_custom_call.1} parent=5 // pred_fallthru
        _
      %p332 = scmp.le.s32.totalorder 1, %s20
      %p333 = scmp.lt.s32.totalorder %s20, 3
      %p334 = pnand %p332, %p333
      %p335 = pneg %p334
      // Predicated region
      $region57: #{tpu_custom_call.1} parent=5 // pred_check
        _
      $region58: #{tpu_custom_call.1} parent=5 // pred_check_branch
        %337 = sbr.rel (%p334) target = $region60
      $region59: #{tpu_custom_call.1} parent=5 // pred_region
        %s338 = ssub.s32 %s20, 1
        // Predicated region
        $region61: #{tpu_custom_call.1} parent=59 // pred_check
          %p339 = pneg %p93
        $region62: #{tpu_custom_call.1} parent=59 // pred_check_branch
          %341 = sbr.rel (%p339) target = $region64
        $region63: #{tpu_custom_call.1} parent=59 // pred_region
          %343 = dma.done [#allocation3], 64
        $region64: #{tpu_custom_call.1} parent=59 // pred_fallthru
          _
        %p344 = scmp.lt.s32.totalorder %s25, 1
        %s345 = scalar_select %p344, %s25, 1
        %s346 = smul.addr %s345, 4
        %s347 = scalar_lea.vmem %s0, %s346
        %p348 = pneg %p46
        %p349 = pneg %p43
        %p350 = scmp.lt.s32.totalorder %s25, 1
        %s351 = scalar_select %p350, %s25, 1
        %s352 = smul.addr %s351, 2
        %s353 = scalar_lea.vmem %s1, %s352
        %p354 = pneg %p72
        %p355 = pneg %p69
        %p356 = pneg %p93
        %p357 = pneg %p90
        %p358 = pneg %p114
        %p359 = pneg %p111
        %p360 = pneg %p135
        %p361 = pneg %p132
        %p362 = pneg %p156
        %p363 = pneg %p153
        %p364 = pneg %p177
        %p365 = pneg %p174
        %p366 = pneg %p198
        %p367 = pneg %p195
        %p368 = pneg %p219
        %p369 = pneg %p216
        %p370 = pneg %p240
        %p371 = pneg %p237
        %p372 = pneg %p266
        %p373 = pneg %p263
        %s374 = sand.u32 %s253, 1
        %s375 = scalar_lea.sflag [#allocation4], %s374
        %s376 = sand.u32 %s253, 1
        %s377 = scalar_lea.vmem [#allocation5], %s376
        %p378 = scmp.lt.s32.totalorder %s25, 1
        %s379 = scalar_select %p378, %s25, 1
        %s380 = smul.addr %s379, 4
        %s381 = scalar_lea.vmem %s0, %s380
        %p382 = scmp.lt.s32.totalorder %s25, 1
        %s383 = scalar_select %p382, %s25, 1
        %s384 = smul.addr %s383, 2
        %s385 = scalar_lea.vmem %s1, %s384
        %v387 = vld [vmem:[%s381] sm:$0xf]
        %v388 = vld [vmem:[%s385] sm:$0x3]
        %v389 = vpack.c.bf16 %v387, %v387
        %v390 = vld [vmem:[#allocation2] sm:$0x7]
        %v391 = vld [vmem:[%s3] sm:$0x1]
        %v393 = vperm.slane %v391, 0
        %vm395 = vcmask 48128
        %v397 = vsel %vm395, %v389, 0
        %vm399 = vcmask 1042432
        %v401 = vsel %vm399, %v390, 0
        %403 = vmatpush.bf16.msra.mxu0 0
        %404 = vmatpush.bf16.msra.mxu0 0
        %405 = vmatpush.bf16.msra.mxu0 0
        %406 = vmatpush.bf16.msra.mxu0 0
        %407 = vmatpush.bf16.msra.mxu0 0
        %408 = vmatpush.bf16.msra.mxu0 0
        %409 = vmatpush.bf16.msra.mxu0 0
        %410 = vmatpush.bf16.msra.mxu0 %v401
        %411 = vmatmul.bf16.gmra.mxu0 %v397
        %v412 = vpop.f32.mrf.mxu0
        %v413 = vadd.f32 %v393, %v412
        %v414 = vpop.f32.mrf.mxu0
        %415 = vdwg.mxu0
        %v416 = vmax.f32 %v413, 0.0
        %v417 = vpack.c.bf16 %v416, %v416
        %v418 = vld [vmem:[%s4] sm:$0xf]
        %v419 = vld [vmem:[%s4 + $0x4] sm:$0xf]
        %v420 = vld [vmem:[%s5] sm:$0x1]
        %v422 = vperm.slane %v420, 0
        %v426 = vunpack.c.l.b16 %v418
        %v427 = vunpack.c.l.b16 %v419
        %v428 = vpack.c.b16 %v427, %v426
        %vm430 = vcmask 130048
        %v432 = vsel %vm430, %v417, 0
        %434 = vmatpush.bf16.msra.mxu0 0
        %435 = vmatpush.bf16.msra.mxu0 0
        %436 = vmatpush.bf16.msra.mxu0 0
        %437 = vmatpush.bf16.msra.mxu0 0
        %438 = vmatpush.bf16.msra.mxu0 0
        %439 = vmatpush.bf16.msra.mxu0 0
        %440 = vmatpush.bf16.msra.mxu0 0
        %441 = vmatpush.bf16.msra.mxu0 %v428
        %442 = vmatmul.bf16.gmra.mxu0 %v432
        %v443 = vpop.f32.mrf.mxu0
        %v444 = vadd.f32 %v422, %v443
        %v445 = vpop.f32.mrf.mxu0
        %446 = vdwg.mxu0
        %v447 = vmax.f32 %v444, 0.0
        %v448 = vpack.c.bf16 %v447, %v447
        %vm449 = vcmask 31744
        %v451 = vsel %vm449, %v388, 0
        %vm453 = vcmask 1041408
        %v455 = vsel %vm453, %v448, 0
        %457 = vmatpush.bf16.msra.mxu0 0
        %458 = vmatpush.bf16.msra.mxu0 0
        %459 = vmatpush.bf16.msra.mxu0 0
        %460 = vmatpush.bf16.msra.mxu0 0
        %461 = vmatpush.bf16.msra.mxu0 0
        %462 = vmatpush.bf16.msra.mxu0 0
        %463 = vmatpush.bf16.msra.mxu0 0
        %464 = vmatpush.bf16.msra.mxu0 %v455
        %465 = vmatmul.bf16.gmra.mxu0 %v451
        %v466 = vpop.f32.mrf.mxu0
        %v467 = vadd.f32 0.0, %v466
        %v468 = vpop.f32.mrf.mxu0
        %469 = vdwg.mxu0
        %v470 = vld [vmem:[%s7] sm:$0x1]
        %v471 = vpack.c.bf16 %v467, %v467
        %v472 = vld [vmem:[%s6] sm:$0x7]
        %v474 = vsel %vm395, %v471, 0
        %v477 = vsel %vm399, %v472, 0
        %479 = vmatpush.bf16.msra.mxu0 0
        %480 = vmatpush.bf16.msra.mxu0 0
        %481 = vmatpush.bf16.msra.mxu0 0
        %482 = vmatpush.bf16.msra.mxu0 0
        %483 = vmatpush.bf16.msra.mxu0 0
        %484 = vmatpush.bf16.msra.mxu0 0
        %485 = vmatpush.bf16.msra.mxu0 0
        %486 = vmatpush.bf16.msra.mxu0 %v477
        %487 = vmatmul.bf16.gmra.mxu0 %v474
        %v488 = vpop.f32.mrf.mxu0
        %v489 = vadd.f32 0.0, %v488
        %v490 = vpop.f32.mrf.mxu0
        %491 = vdwg.mxu0
        %v492 = vadd.f32 %v470, %v489
        %s493 = scalar_lea.vmem %s6, 4
        %v494 = vld [vmem:[%s493] sm:$0x7]
        %v495 = vshrl.u32 %v471, 16
        %v498 = vsel %vm395, %v495, 0
        %v501 = vsel %vm399, %v494, 0
        %503 = vmatpush.bf16.msra.mxu0 0
        %504 = vmatpush.bf16.msra.mxu0 0
        %505 = vmatpush.bf16.msra.mxu0 0
        %506 = vmatpush.bf16.msra.mxu0 0
        %507 = vmatpush.bf16.msra.mxu0 0
        %508 = vmatpush.bf16.msra.mxu0 0
        %509 = vmatpush.bf16.msra.mxu0 0
        %510 = vmatpush.bf16.msra.mxu0 %v501
        %511 = vmatmul.bf16.gmra.mxu0 %v498
        %v512 = vpop.f32.mrf.mxu0
        %v513 = vadd.f32 0.0, %v512
        %v514 = vpop.f32.mrf.mxu0
        %515 = vdwg.mxu0
        %v516 = vadd.f32 %v492, %v513
        %s517 = scalar_lea.vmem %s6, 8
        %v518 = vld [vmem:[%s517] sm:$0x7]
        %v520 = vrot.slane %v471, 1
        %v522 = vsel %vm395, %v520, 0
        %v525 = vsel %vm399, %v518, 0
        %527 = vmatpush.bf16.msra.mxu0 0
        %528 = vmatpush.bf16.msra.mxu0 0
        %529 = vmatpush.bf16.msra.mxu0 0
        %530 = vmatpush.bf16.msra.mxu0 0
        %531 = vmatpush.bf16.msra.mxu0 0
        %532 = vmatpush.bf16.msra.mxu0 0
        %533 = vmatpush.bf16.msra.mxu0 0
        %534 = vmatpush.bf16.msra.mxu0 %v525
        %535 = vmatmul.bf16.gmra.mxu0 %v522
        %v536 = vpop.f32.mrf.mxu0
        %v537 = vadd.f32 0.0, %v536
        %v538 = vpop.f32.mrf.mxu0
        %539 = vdwg.mxu0
        %v540 = vadd.f32 %v516, %v537
        %s541 = scalar_lea.vmem %s6, 12
        %v542 = vld [vmem:[%s541] sm:$0x7]
        %v543 = vrot.slane %v495, 1
        %v545 = vsel %vm395, %v543, 0
        %v548 = vsel %vm399, %v542, 0
        %550 = vmatpush.bf16.msra.mxu0 0
        %551 = vmatpush.bf16.msra.mxu0 0
        %552 = vmatpush.bf16.msra.mxu0 0
        %553 = vmatpush.bf16.msra.mxu0 0
        %554 = vmatpush.bf16.msra.mxu0 0
        %555 = vmatpush.bf16.msra.mxu0 0
        %556 = vmatpush.bf16.msra.mxu0 0
        %557 = vmatpush.bf16.msra.mxu0 %v548
        %558 = vmatmul.bf16.gmra.mxu0 %v545
        %v559 = vpop.f32.mrf.mxu0
        %v560 = vadd.f32 0.0, %v559
        %v561 = vpop.f32.mrf.mxu0
        %562 = vdwg.mxu0
        %v563 = vadd.f32 %v540, %v560
        %v564 = vmax.f32 %v563, 0.0
        %v565 = vpack.c.bf16 %v564, %v564
        %v566 = vld [vmem:[%s8] sm:$0xf]
        %v567 = vld [vmem:[%s8 + $0x4] sm:$0xf]
        %v568 = vld [vmem:[%s8 + $0x8] sm:$0xf]
        %v569 = vld [vmem:[%s8 + $0xc] sm:$0xf]
        %v570 = vld [vmem:[%s8 + $0x10] sm:$0xf]
        %v571 = vld [vmem:[%s8 + $0x14] sm:$0xf]
        %v572 = vld [vmem:[%s8 + $0x18] sm:$0xf]
        %v573 = vld [vmem:[%s8 + $0x1c] sm:$0xf]
        %v574 = vld [vmem:[%s9] sm:$0x1]
        %v583 = vunpack.c.l.b16 %v566
        %v584 = vunpack.c.l.b16 %v567
        %v585 = vunpack.c.l.b16 %v568
        %v586 = vunpack.c.l.b16 %v569
        %v587 = vunpack.c.l.b16 %v570
        %v588 = vunpack.c.l.b16 %v571
        %v589 = vunpack.c.l.b16 %v572
        %v590 = vunpack.c.l.b16 %v573
        %v591 = vpack.c.b16 %v584, %v583
        %v592 = vpack.c.b16 %v586, %v585
        %v593 = vpack.c.b16 %v588, %v587
        %v594 = vpack.c.b16 %v590, %v589
        %vm599 = vcmask 523264
        %v601 = vsel %vm599, %v565, 0
        %603 = vmatpush.bf16.msra.mxu0 0
        %604 = vmatpush.bf16.msra.mxu0 0
        %605 = vmatpush.bf16.msra.mxu0 0
        %606 = vmatpush.bf16.msra.mxu0 0
        %607 = vmatpush.bf16.msra.mxu0 %v594
        %608 = vmatpush.bf16.msra.mxu0 %v593
        %609 = vmatpush.bf16.msra.mxu0 %v592
        %610 = vmatpush.bf16.msra.mxu0 %v591
        %611 = vmatmul.bf16.gmra.mxu0 %v601
        %v612 = vpop.f32.mrf.mxu0
        %v613 = vadd.f32 %v574, %v612
        %v614 = vpop.f32.mrf.mxu0
        %615 = vdwg.mxu0
        %v616 = vmax.f32 %v613, 0.0
        %617 = vst [vmem:[%s377] sm:$0x1] %v616
        %s618 = sand.u32 %s253, 1
        %s619 = scalar_lea.sflag [#allocation4], %s618
        %s620 = sand.u32 %s253, 1
        %s621 = scalar_lea.vmem [#allocation5], %s620
        // Predicated region
        $region65: #{tpu_custom_call.1} parent=59 // pred_check
          %p622 = pneg %p263
        $region66: #{tpu_custom_call.1} parent=59 // pred_check_branch
          %624 = sbr.rel (%p622) target = $region68
        $region67: #{tpu_custom_call.1} parent=59 // pred_region
          %626 = vsyncadd %s619, 0
          %s627 = scalar_lea.hbm %s10, %s25
          %s629 = sshll.u32 %s621, 4
          %s630 = int_to_ptr.vmem [resolvable:$true] %s629
          %s631 = sshll.u32 %s627, 4
          %s632 = int_to_ptr.hbm [resolvable:$true] %s631
          %634 = dma.vmem_to_hbm [thread:$0]  %s630, 16, %s632, %s619
        $region68: #{tpu_custom_call.1} parent=59 // pred_fallthru
          _
      $region60: #{tpu_custom_call.1} parent=5 // pred_fallthru
        _
      %p635 = scmp.le.s32.totalorder 2, %s20
      // Predicated region
      $region69: #{tpu_custom_call.1} parent=5 // pred_check
        %p636 = pneg %p635
      $region70: #{tpu_custom_call.1} parent=5 // pred_check_branch
        %638 = sbr.rel (%p636) target = $region72
      $region71: #{tpu_custom_call.1} parent=5 // pred_region
        %s639 = ssub.s32 %s20, 2
        // Predicated region
        $region73: #{tpu_custom_call.1} parent=71 // pred_check
          %p640 = pneg %p269
        $region74: #{tpu_custom_call.1} parent=71 // pred_check_branch
          %642 = sbr.rel (%p640) target = $region76
        $region75: #{tpu_custom_call.1} parent=71 // pred_region
          %s643 = sand.u32 %s254, 1
          %s644 = scalar_lea.sflag [#allocation4], %s643
          %s645 = sand.u32 %s254, 1
          %s646 = scalar_lea.vmem [#allocation5], %s645
          %648 = dma.done %s644, 16
        $region76: #{tpu_custom_call.1} parent=71 // pred_fallthru
          _
      $region72: #{tpu_custom_call.1} parent=5 // pred_fallthru
        _
    $region6: #{tpu_custom_call.1} parent=1 // loop_footer
      %s24 = sadd.s32 1, %s20
    $region7: #{tpu_custom_call.1} parent=1 // loop_footer_branch
      %19 = sbr.rel target = $region3
    $region8: #{tpu_custom_call.1} parent=1 // loop_exit
      _
    %649 = vsyncpa [#allocation3], 1
    %s650 = scalar_lea.sflag [#allocation3], 1
    %651 = vsyncpa %s650, 1
    %652 = vsyncpa [#allocation4], 1
    %s653 = scalar_lea.sflag [#allocation4], 1
    %654 = vsyncpa %s653, 1

</llo_original>
